<compile_context>
chip_gen: v5e
topology: v5e:2x2
jax: 0.10.0
libtpu: 0.0.40
codegen_flags: <defaults>
</compile_context>

<pallas_src>
import jax
import jax.numpy as jnp
from jax.experimental import pallas as pl
from jax.experimental.pallas import tpu as pltpu

LANE = 128                    # lane-dense padding granularity (portable v5e/v6e/v7x)
MAX_ROW_TILE = 256            # batch row tile — safe ceiling for v7x's 64 MiB VMEM
VMEM_TILE_BUDGET = 44 << 20   # working-set target used for tile selection
VMEM_LIMIT_CAP = 56 << 20     # never request more scoped VMEM than this


def _round_up(x, m):
    return ((x + m - 1) // m) * m


def _vmem_footprint(tm, th, d_in_p, h_p, d_out_p, w_bytes, x_bytes):
    """Approximate per-kernel VMEM working set (bytes) for a given tiling."""
    w_bufs = 1 if th == h_p else 2                       # resident vs streamed
    weights = (d_in_p * th + th * d_out_p + th) * w_bytes * w_bufs
    b2 = d_out_p * w_bytes                               # single-buffered
    x = tm * d_in_p * x_bytes * 2                        # double-buffered x tile
    out = tm * d_out_p * x_bytes * 2                     # double-buffered out tile
    acc = tm * d_out_p * 4                               # f32 accumulator scratch
    hidden = tm * th * 4 * 2                             # f32 h temp (+ slack)
    return weights + b2 + x + out + acc + hidden


def _two_layer_kernel(x_ref, w1t_ref, b1_ref, w2t_ref, b2_ref, o_ref, acc_ref):
    j = pl.program_id(1)                                 # hidden-dim (reduction) axis

    @pl.when(j == 0)
    def _():
        acc_ref[...] = jnp.zeros_like(acc_ref)

    # Hidden-layer slice: linear1 + clamp(min=0) (ReLU).  f32 MXU accumulation.
    h = jnp.dot(x_ref[...], w1t_ref[...], preferred_element_type=jnp.float32)
    h = jnp.maximum(h + b1_ref[...], 0.0)                # fused add+max (VPU filler)
    # Cast h to the weight dtype: bf16 weights get the fast MXU path; no-op for f32.
    h = h.astype(w2t_ref.dtype)
    # Output-layer slice, accumulated in f32 across hidden-dim blocks.
    acc_ref[...] += jnp.dot(h, w2t_ref[...], preferred_element_type=jnp.float32)

    @pl.when(j == pl.num_programs(1) - 1)
    def _():
        o_ref[...] = (acc_ref[...] + b2_ref[...]).astype(o_ref.dtype)


def prepare_params(w1, b1, w2, b2, lane=LANE):
    """Pad + pre-transpose the weights ONCE at model load; reuse across calls."""
    H, D_in = w1.shape
    D_out = w2.shape[0]
    dt = w1.dtype
    D_in_p = _round_up(D_in, lane)
    H_p = _round_up(H, lane)
    D_out_p = _round_up(D_out, lane)
    # Zero padding is numerically exact here: ReLU(0)=0, padded K columns
    # contribute 0, padded output columns are sliced off.
    w1t = jnp.zeros((D_in_p, H_p), dt).at[:D_in, :H].set(jnp.transpose(w1))
    w2t = jnp.zeros((H_p, D_out_p), dt).at[:H, :D_out].set(jnp.transpose(w2))
    b1p = jnp.zeros((1, H_p), dt).at[0, :H].set(b1)
    b2p = jnp.zeros((1, D_out_p), dt).at[0, :D_out].set(b2)
    return {"w1t": w1t, "b1": b1p, "w2t": w2t, "b2": b2p,
            "D_in": D_in, "H": H, "D_out": D_out}


def two_layer_net_apply(x, params):
    """x: (N, D_in) -> (N, D_out) using pre-padded params from prepare_params."""
    w1t, b1p, w2t, b2p = params["w1t"], params["b1"], params["w2t"], params["b2"]
    D_in, D_out = params["D_in"], params["D_out"]
    N = x.shape[0]
    D_in_p, H_p = w1t.shape
    D_out_p = w2t.shape[1]

    dt = x.dtype
    w_bytes = w1t.dtype.itemsize
    x_bytes = x.dtype.itemsize

    # ---- batch tiling --------------------------------------------------------
    tm = MAX_ROW_TILE if N >= MAX_ROW_TILE else _round_up(N, 8)
    N_p = _round_up(N, tm)
    grid_n = N_p // tm

    # ---- hidden-dim (reduction) tiling: keep weights resident if they fit ----
    units = H_p // LANE
    th = H_p
    for d in range(units, 0, -1):
        if units % d:
            continue
        cand = d * LANE
        if _vmem_footprint(tm, cand, D_in_p, H_p, D_out_p, w_bytes, x_bytes) <= VMEM_TILE_BUDGET:
            th = cand
            break
    else:
        # TODO(synk): also tile D_in / D_out for extreme layer sizes.
        th = LANE
    grid_h = H_p // th
    resident = grid_h == 1

    footprint = _vmem_footprint(tm, th, D_in_p, H_p, D_out_p, w_bytes, x_bytes)
    vmem_limit = min(VMEM_LIMIT_CAP, max(32 << 20, int(footprint * 1.5) + (2 << 20)))

    # ---- pad x only when needed (skip the copy for aligned shapes) -----------
    if N_p != N or x.shape[1] != D_in_p:
        x_p = jnp.zeros((N_p, D_in_p), dt).at[:N, :D_in].set(x)
    else:
        x_p = x

    # ---- cost estimate (dtype-aware, advisory) --------------------------------
    w_reads = 1 if resident else grid_n
    cost = pl.CostEstimate(
        flops=2 * N_p * (D_in_p * H_p + H_p * D_out_p),
        transcendentals=0,
        bytes_accessed=(N_p * D_in_p * x_bytes
                        + w_reads * (D_in_p * H_p + H_p + H_p * D_out_p) * w_bytes
                        + D_out_p * w_bytes
                        + N_p * D_out_p * x_bytes),
    )

    # ---- BlockSpecs -----------------------------------------------------------
    def _wspec(shape, imap):
        # Constant-index (VMEM-resident) weights: single-buffer to halve VMEM.
        if resident:
            return pl.BlockSpec(shape, imap, pipeline_mode=pl.Buffered(1))
        return pl.BlockSpec(shape, imap)

    in_specs = [
        pl.BlockSpec((tm, D_in_p), lambda i, j: (i, 0)),           # x: pipelined row tiles
        _wspec((D_in_p, th), lambda i, j: (0, j)),                 # W1^T block
        _wspec((1, th), lambda i, j: (0, j)),                      # b1 block
        _wspec((th, D_out_p), lambda i, j: (j, 0)),                # W2^T block
        pl.BlockSpec((1, D_out_p), lambda i, j: (0, 0),
                     pipeline_mode=pl.Buffered(1)),                # b2: always resident
    ]
    out_spec = pl.BlockSpec((tm, D_out_p), lambda i, j: (i, 0))    # constant across j

    out_p = pl.pallas_call(
        _two_layer_kernel,
        out_shape=jax.ShapeDtypeStruct((N_p, D_out_p), dt),
        grid_spec=pltpu.PrefetchScalarGridSpec(
            num_scalar_prefetch=0,
            grid=(grid_n, grid_h),
            in_specs=in_specs,
            out_specs=out_spec,
            scratch_shapes=[pltpu.VMEM((tm, D_out_p), jnp.float32)],
        ),
        compiler_params=pltpu.CompilerParams(
            # Batch axis parallel (v7x megacore); hidden axis is a reduction.
            dimension_semantics=("parallel", "arbitrary"),
            vmem_limit_bytes=vmem_limit,
        ),
        cost_estimate=cost,
    )(x_p, w1t, b1p, w2t, b2p)

    if N_p != N or D_out_p != D_out:
        return out_p[:N, :D_out]
    return out_p


def two_layer_net(x, w1, b1, w2, b2):
    """Convenience one-shot wrapper (prefer prepare_params + apply in a loop)."""
    return two_layer_net_apply(x, prepare_params(w1, b1, w2, b2))


if __name__ == "__main__":
    # Small shapes implied by the module: batch N, D_in, H, D_out.
    N, D_in, H, D_out = 8, 32, 64, 16

    key = jax.random.PRNGKey(0)
    kx, kw1, kb1, kw2, kb2 = jax.random.split(key, 5)

    # Deterministic init mimicking nn.Linear default U(-1/sqrt(fan_in), +1/sqrt(fan_in)).
    x = jax.random.normal(kx, (N, D_in), dtype=jnp.float32)
    bound1 = 1.0 / jnp.sqrt(D_in)
    w1 = jax.random.uniform(kw1, (H, D_in), minval=-bound1, maxval=bound1,
                            dtype=jnp.float32)
    b1 = jax.random.uniform(kb1, (H,), minval=-bound1, maxval=bound1,
                            dtype=jnp.float32)
    bound2 = 1.0 / jnp.sqrt(H)
    w2 = jax.random.uniform(kw2, (D_out, H), minval=-bound2, maxval=bound2,
                            dtype=jnp.float32)
    b2 = jax.random.uniform(kb2, (D_out,), minval=-bound2, maxval=bound2,
                            dtype=jnp.float32)

    # Weight prep done ONCE (cached), then applied.
    params = prepare_params(w1, b1, w2, b2)
    y = two_layer_net_apply(x, params)
    jax.block_until_ready(y)

    # Pure-JAX reference check of the forward semantics.
    h_ref = jnp.maximum(x @ w1.T + b1, 0.0)
    y_ref = h_ref @ w2.T + b2
    assert y.shape == (N, D_out)
    assert jnp.allclose(y, y_ref, atol=1e-4, rtol=1e-4)

    print("KERNEL_OK")
</pallas_src>

<mosaic_0001>
module attributes {stable_mosaic.version = 11 : i64} {
  func.func @_two_layer_kernel(%arg0: i32, %arg1: i32, %arg2: memref<8x128xf32, #tpu.memory_space<vmem>>, %arg3: memref<128x128xf32, #tpu.memory_space<vmem>>, %arg4: memref<1x128xf32, #tpu.memory_space<vmem>>, %arg5: memref<128x128xf32, #tpu.memory_space<vmem>>, %arg6: memref<1x128xf32, #tpu.memory_space<vmem>>, %arg7: memref<8x128xf32, #tpu.memory_space<vmem>>, %arg8: memref<8x128xf32, #tpu.memory_space<vmem>>) attributes {dimension_semantics = [#tpu.dimension_semantics<parallel>, #tpu.dimension_semantics<arbitrary>], iteration_bounds = array<i64: 1, 1>, scalar_prefetch = 0 : i64, scratch_operands = 1 : i64, tpu.core_type = #tpu.core_type<tc>, window_params = [{transform_indices = @transform_0, window_bounds = array<i64: 8, 128>}, {pipeline_mode = #tpu.pipeline_mode<synchronous>, transform_indices = @transform_1, window_bounds = array<i64: 128, 128>}, {pipeline_mode = #tpu.pipeline_mode<synchronous>, transform_indices = @transform_2, window_bounds = array<i64: 1, 128>}, {pipeline_mode = #tpu.pipeline_mode<synchronous>, transform_indices = @transform_3, window_bounds = array<i64: 128, 128>}, {pipeline_mode = #tpu.pipeline_mode<synchronous>, transform_indices = @transform_4, window_bounds = array<i64: 1, 128>}, {transform_indices = @transform_5, window_bounds = array<i64: 8, 128>}]} {
    %c0_i32 = arith.constant 0 : i32
    %0 = arith.cmpi eq, %arg1, %c0_i32 : i32
    %1 = arith.extui %0 : i1 to i32
    %c0_i32_0 = arith.constant 0 : i32
    %2 = arith.cmpi ne, %1, %c0_i32_0 : i32
    scf.if %2 {
      %cst_16 = arith.constant 0.000000e+00 : f32
      %19 = vector.broadcast %cst_16 : f32 to vector<8x128xf32>
      %c0_17 = arith.constant 0 : index
      %c0_18 = arith.constant 0 : index
      %20 = vector.load %arg8[%c0_17, %c0_18] : memref<8x128xf32, #tpu.memory_space<vmem>>, vector<8x128xf32>
      tpu.vector_store %arg8[%c0_17, %c0_18], %19 {strides = array<i32>} : memref<8x128xf32, #tpu.memory_space<vmem>>, vector<8x128xf32>,
    } else {
    }
    %c0 = arith.constant 0 : index
    %c0_1 = arith.constant 0 : index
    %3 = vector.load %arg2[%c0, %c0_1] : memref<8x128xf32, #tpu.memory_space<vmem>>, vector<8x128xf32>
    %c0_2 = arith.constant 0 : index
    %c0_3 = arith.constant 0 : index
    %4 = vector.load %arg3[%c0_2, %c0_3] : memref<128x128xf32, #tpu.memory_space<vmem>>, vector<128x128xf32>
    %cst = arith.constant dense<0.000000e+00> : vector<8x128xf32>
    %5 = tpu.matmul %3, %4, %cst {dimension_numbers = #tpu.dot_dimension_numbers<[1], [0], [0], [1], [0, 0, 1, 1], [], []>} : vector<8x128xf32>, vector<128x128xf32>, vector<8x128xf32> -> vector<8x128xf32>
    %c0_4 = arith.constant 0 : index
    %c0_5 = arith.constant 0 : index
    %6 = vector.load %arg4[%c0_4, %c0_5] : memref<1x128xf32, #tpu.memory_space<vmem>>, vector<1x128xf32>
    %7 = vector.broadcast %6 : vector<1x128xf32> to vector<8x128xf32>
    %8 = arith.addf %5, %7 : vector<8x128xf32>
    %cst_6 = arith.constant 0.000000e+00 : f32
    %9 = vector.broadcast %cst_6 : f32 to vector<8x128xf32>
    %10 = arith.maximumf %8, %9 : vector<8x128xf32>
    %c0_7 = arith.constant 0 : index
    %c0_8 = arith.constant 0 : index
    %11 = vector.load %arg8[%c0_7, %c0_8] : memref<8x128xf32, #tpu.memory_space<vmem>>, vector<8x128xf32>
    %c0_9 = arith.constant 0 : index
    %c0_10 = arith.constant 0 : index
    %12 = vector.load %arg5[%c0_9, %c0_10] : memref<128x128xf32, #tpu.memory_space<vmem>>, vector<128x128xf32>
    %cst_11 = arith.constant dense<0.000000e+00> : vector<8x128xf32>
    %13 = tpu.matmul %10, %12, %cst_11 {dimension_numbers = #tpu.dot_dimension_numbers<[1], [0], [0], [1], [0, 0, 1, 1], [], []>} : vector<8x128xf32>, vector<128x128xf32>, vector<8x128xf32> -> vector<8x128xf32>
    %14 = arith.addf %11, %13 : vector<8x128xf32>
    %c0_12 = arith.constant 0 : index
    %c0_13 = arith.constant 0 : index
    %15 = vector.load %arg8[%c0_12, %c0_13] : memref<8x128xf32, #tpu.memory_space<vmem>>, vector<8x128xf32>
    tpu.vector_store %arg8[%c0_12, %c0_13], %14 {strides = array<i32>} : memref<8x128xf32, #tpu.memory_space<vmem>>, vector<8x128xf32>,
    %c0_i32_14 = arith.constant 0 : i32
    %16 = arith.cmpi eq, %arg1, %c0_i32_14 : i32
    %17 = arith.extui %16 : i1 to i32
    %c0_i32_15 = arith.constant 0 : i32
    %18 = arith.cmpi ne, %17, %c0_i32_15 : i32
    scf.if %18 {
      %c0_16 = arith.constant 0 : index
      %c0_17 = arith.constant 0 : index
      %19 = vector.load %arg8[%c0_16, %c0_17] : memref<8x128xf32, #tpu.memory_space<vmem>>, vector<8x128xf32>
      %c0_18 = arith.constant 0 : index
      %c0_19 = arith.constant 0 : index
      %20 = vector.load %arg6[%c0_18, %c0_19] : memref<1x128xf32, #tpu.memory_space<vmem>>, vector<1x128xf32>
      %21 = vector.broadcast %20 : vector<1x128xf32> to vector<8x128xf32>
      %22 = arith.addf %19, %21 : vector<8x128xf32>
      %c0_20 = arith.constant 0 : index
      %c0_21 = arith.constant 0 : index
      %23 = vector.load %arg7[%c0_20, %c0_21] : memref<8x128xf32, #tpu.memory_space<vmem>>, vector<8x128xf32>
      tpu.vector_store %arg7[%c0_20, %c0_21], %22 {strides = array<i32>} : memref<8x128xf32, #tpu.memory_space<vmem>>, vector<8x128xf32>,
    } else {
    }
    return
  }
  func.func @transform_0(%arg0: i32, %arg1: i32) -> (i32, i32) {
    %c0_i32 = arith.constant 0 : i32
    %c0_i32_0 = arith.constant 0 : i32
    return %arg0, %c0_i32 : i32, i32
  }
  func.func @transform_1(%arg0: i32, %arg1: i32) -> (i32, i32) {
    %c0_i32 = arith.constant 0 : i32
    %c0_i32_0 = arith.constant 0 : i32
    return %c0_i32, %arg1 : i32, i32
  }
  func.func @transform_2(%arg0: i32, %arg1: i32) -> (i32, i32) {
    %c0_i32 = arith.constant 0 : i32
    %c0_i32_0 = arith.constant 0 : i32
    return %c0_i32, %arg1 : i32, i32
  }
  func.func @transform_3(%arg0: i32, %arg1: i32) -> (i32, i32) {
    %c0_i32 = arith.constant 0 : i32
    %c0_i32_0 = arith.constant 0 : i32
    return %arg1, %c0_i32 : i32, i32
  }
  func.func @transform_4(%arg0: i32, %arg1: i32) -> (i32, i32) {
    %c0_i32 = arith.constant 0 : i32
    %c0_i32_0 = arith.constant 0 : i32
    %c0_i32_1 = arith.constant 0 : i32
    return %c0_i32, %c0_i32_0 : i32, i32
  }
  func.func @transform_5(%arg0: i32, %arg1: i32) -> (i32, i32) {
    %c0_i32 = arith.constant 0 : i32
    %c0_i32_0 = arith.constant 0 : i32
    return %arg0, %c0_i32 : i32, i32
  }
}

</mosaic_0001>

<llo_original>
// kernel: tpu_custom_call.1
$region0: #{tpu_custom_call.1}
  #allocation0 [shape = 'u32[]', space=smem, size = 0x4, offset = 0x4, fixed_abs, tag = 'smem constant byte address 0x4 - core index']
  #allocation1 [shape = 'u32[72,128]{1,0:T(1,128)}', space=vmem, size = 0x9000, scoped, tag = 'internal scratch']
  #allocation2 [shape = 'f32[8,128]{1,0:T(8,128)}', space=vmem, size = 0x1000, scoped, tag = 'scratch operand']
  %s0 = inlined_call_operand.hbm [shape: f32[8,128], index: 0, kind: input, shape index: {}]
  %s1 = inlined_call_operand.hbm [shape: f32[128,128], index: 1, kind: input, shape index: {}]
  %s2 = inlined_call_operand.vmem [shape: f32[1,128], index: 2, kind: input, shape index: {}]
  %s3 = inlined_call_operand.hbm [shape: f32[128,128], index: 3, kind: input, shape index: {}]
  %s4 = inlined_call_operand.vmem [shape: f32[1,128], index: 4, kind: input, shape index: {}]
  %s5 = inlined_call_operand.hbm [shape: f32[8,128], index: 5, kind: output, shape index: {}]
  %s6 = sld [smem:[#allocation0]]
  $region50: #{tpu_custom_call.1} parent=0
    _
  %s8 = ssub.s32 1, %s6
  %s9 = scalar_select 0, %s8, %s6
  $region1: #{tpu_custom_call.1} parent=0
    #allocation3 [shape = 'u8[4096]{0}', space=vmem, size = 0x1000, scoped, tag = 'input window, operand 0, single buffered']
    #allocation4 [shape = 's32[1]{0}', space=sflag, size = 0x4, scoped, tag = 'scoped memory for tpu_custom_call.1']
    #allocation5 [shape = 's32[1]{0}', space=sflag, size = 0x4, scoped, tag = 'scoped memory for tpu_custom_call.1']
    #allocation6 [shape = 'u8[65536]{0}', space=vmem, size = 0x10000, scoped, tag = 'input window, operand 1, single buffered']
    #allocation7 [shape = 's32[1]{0}', space=sflag, size = 0x4, scoped, tag = 'scoped memory for tpu_custom_call.1']
    #allocation8 [shape = 'u8[65536]{0}', space=vmem, size = 0x10000, scoped, tag = 'input window, operand 3, single buffered']
    #allocation9 [shape = 'u8[4096]{0}', space=vmem, size = 0x1000, scoped, tag = 'output window, operand 0, single buffered']
    %10 = vsyncpa [#allocation4], 0
    %11 = vsyncpa [#allocation7], 0
    %12 = vsyncpa [#allocation5], 0
    // Predicated region
    $region2: #{tpu_custom_call.1} parent=1 // pred_check
      _
    $region3: #{tpu_custom_call.1} parent=1 // pred_check_branch
      %14 = sbr.rel (0) target = $region5
    $region4: #{tpu_custom_call.1} parent=1 // pred_region
      %16 = vsyncadd [#allocation4], 0
      %s18 = sshll.u32 %s0, 4
      %s19 = int_to_ptr.hbm [resolvable:$true] %s18
      %s20 = sshll.u32 [#allocation3], 4
      %s21 = int_to_ptr.vmem [resolvable:$true] %s20
      %23 = dma.hbm_to_vmem [thread:$0]  %s19, 128, %s21, [#allocation4]
    $region5: #{tpu_custom_call.1} parent=1 // pred_fallthru
      _
    // Predicated region
    $region6: #{tpu_custom_call.1} parent=1 // pred_check
      _
    $region7: #{tpu_custom_call.1} parent=1 // pred_check_branch
      %25 = sbr.rel (0) target = $region9
    $region8: #{tpu_custom_call.1} parent=1 // pred_region
      %27 = vsyncadd [#allocation7], 0
      %s28 = sshll.u32 %s1, 4
      %s29 = int_to_ptr.hbm [resolvable:$true] %s28
      %s30 = sshll.u32 [#allocation6], 4
      %s31 = int_to_ptr.vmem [resolvable:$true] %s30
      %36 = dma.hbm_to_vmem [thread:$0]  %s29, 2048, %s31, [#allocation7], 128, 128, 8
    $region9: #{tpu_custom_call.1} parent=1 // pred_fallthru
      _
    // Predicated region
    $region10: #{tpu_custom_call.1} parent=1 // pred_check
      _
    $region11: #{tpu_custom_call.1} parent=1 // pred_check_branch
      %38 = sbr.rel (0) target = $region13
    $region12: #{tpu_custom_call.1} parent=1 // pred_region
      _
    $region13: #{tpu_custom_call.1} parent=1 // pred_fallthru
      _
    // Predicated region
    $region14: #{tpu_custom_call.1} parent=1 // pred_check
      _
    $region15: #{tpu_custom_call.1} parent=1 // pred_check_branch
      %40 = sbr.rel (0) target = $region17
    $region16: #{tpu_custom_call.1} parent=1 // pred_region
      %42 = vsyncadd [#allocation7], 0
      %s43 = sshll.u32 %s3, 4
      %s44 = int_to_ptr.hbm [resolvable:$true] %s43
      %s45 = sshll.u32 [#allocation8], 4
      %s46 = int_to_ptr.vmem [resolvable:$true] %s45
      %51 = dma.hbm_to_vmem [thread:$0]  %s44, 2048, %s46, [#allocation7], 128, 128, 8
    $region17: #{tpu_custom_call.1} parent=1 // pred_fallthru
      _
    // Predicated region
    $region18: #{tpu_custom_call.1} parent=1 // pred_check
      _
    $region19: #{tpu_custom_call.1} parent=1 // pred_check_branch
      %53 = sbr.rel (0) target = $region21
    $region20: #{tpu_custom_call.1} parent=1 // pred_region
      _
    $region21: #{tpu_custom_call.1} parent=1 // pred_fallthru
      _
    // Predicated region
    $region22: #{tpu_custom_call.1} parent=1 // pred_check
      _
    $region23: #{tpu_custom_call.1} parent=1 // pred_check_branch
      %55 = sbr.rel (0) target = $region25
    $region24: #{tpu_custom_call.1} parent=1 // pred_region
      %57 = dma.done [#allocation4], 128
    $region25: #{tpu_custom_call.1} parent=1 // pred_fallthru
      _
    // Predicated region
    $region26: #{tpu_custom_call.1} parent=1 // pred_check
      _
    $region27: #{tpu_custom_call.1} parent=1 // pred_check_branch
      %59 = sbr.rel (0) target = $region29
    $region28: #{tpu_custom_call.1} parent=1 // pred_region
      %61 = dma.done [#allocation7], 2048
    $region29: #{tpu_custom_call.1} parent=1 // pred_fallthru
      _
    // Predicated region
    $region30: #{tpu_custom_call.1} parent=1 // pred_check
      _
    $region31: #{tpu_custom_call.1} parent=1 // pred_check_branch
      %63 = sbr.rel (0) target = $region33
    $region32: #{tpu_custom_call.1} parent=1 // pred_region
      %65 = dma.done [#allocation7], 2048
    $region33: #{tpu_custom_call.1} parent=1 // pred_fallthru
      _
    %p66 = scmp.eq.s32.totalorder 0, 0
    // Predicated region
    $region34: #{tpu_custom_call.1} parent=1 // pred_check
      %p67 = pneg %p66
    $region35: #{tpu_custom_call.1} parent=1 // pred_check_branch
      %69 = sbr.rel (%p67) target = $region37
    $region36: #{tpu_custom_call.1} parent=1 // pred_region
      %70 = vst [vmem:[#allocation2] sm:$0xff] 0.0
    $region37: #{tpu_custom_call.1} parent=1 // pred_fallthru
      _
    %v71 = vld [vmem:[#allocation3] sm:$0xff]
    %v72 = vld [vmem:[#allocation6] sm:$0xff]
    %v73 = vld [vmem:[#allocation6 + $0x8] sm:$0xff]
    %v74 = vld [vmem:[#allocation6 + $0x10] sm:$0xff]
    %v75 = vld [vmem:[#allocation6 + $0x18] sm:$0xff]
    %v76 = vld [vmem:[#allocation6 + $0x20] sm:$0xff]
    %v77 = vld [vmem:[#allocation6 + $0x28] sm:$0xff]
    %v78 = vld [vmem:[#allocation6 + $0x30] sm:$0xff]
    %v79 = vld [vmem:[#allocation6 + $0x38] sm:$0xff]
    %v80 = vld [vmem:[#allocation6 + $0x40] sm:$0xff]
    %v81 = vld [vmem:[#allocation6 + $0x48] sm:$0xff]
    %v82 = vld [vmem:[#allocation6 + $0x50] sm:$0xff]
    %v83 = vld [vmem:[#allocation6 + $0x58] sm:$0xff]
    %v84 = vld [vmem:[#allocation6 + $0x60] sm:$0xff]
    %v85 = vld [vmem:[#allocation6 + $0x68] sm:$0xff]
    %v86 = vld [vmem:[#allocation6 + $0x70] sm:$0xff]
    %v87 = vld [vmem:[#allocation6 + $0x78] sm:$0xff]
    %v88 = vld [vmem:[%s2] sm:$0x1]
    %v90 = vperm.slane %v88, 0
    %92 = vmatpush.msra.mxu0 %v87
    %93 = vmatpush.msra.mxu0 %v86
    %94 = vmatpush.msra.mxu0 %v85
    %95 = vmatpush.msra.mxu0 %v84
    %96 = vmatpush.msra.mxu0 %v83
    %97 = vmatpush.msra.mxu0 %v82
    %98 = vmatpush.msra.mxu0 %v81
    %99 = vmatpush.msra.mxu0 %v80
    %100 = vmatpush.msra.mxu0 %v79
    %101 = vmatpush.msra.mxu0 %v78
    %102 = vmatpush.msra.mxu0 %v77
    %103 = vmatpush.msra.mxu0 %v76
    %104 = vmatpush.msra.mxu0 %v75
    %105 = vmatpush.msra.mxu0 %v74
    %106 = vmatpush.msra.mxu0 %v73
    %107 = vmatpush.msra.mxu0 %v72
    %108 = vmatmul.f32.gmra.mxu0 %v71
    %v109 = vpop.f32.mrf.mxu0
    %v110 = vadd.f32 %v90, %v109
    %111 = vdwg.mxu0
    %v112 = vmax.f32 %v110, 0.0
    %v113 = vld [vmem:[#allocation2] sm:$0xff]
    %v114 = vld [vmem:[#allocation8] sm:$0xff]
    %v115 = vld [vmem:[#allocation8 + $0x8] sm:$0xff]
    %v116 = vld [vmem:[#allocation8 + $0x10] sm:$0xff]
    %v117 = vld [vmem:[#allocation8 + $0x18] sm:$0xff]
    %v118 = vld [vmem:[#allocation8 + $0x20] sm:$0xff]
    %v119 = vld [vmem:[#allocation8 + $0x28] sm:$0xff]
    %v120 = vld [vmem:[#allocation8 + $0x30] sm:$0xff]
    %v121 = vld [vmem:[#allocation8 + $0x38] sm:$0xff]
    %v122 = vld [vmem:[#allocation8 + $0x40] sm:$0xff]
    %v123 = vld [vmem:[#allocation8 + $0x48] sm:$0xff]
    %v124 = vld [vmem:[#allocation8 + $0x50] sm:$0xff]
    %v125 = vld [vmem:[#allocation8 + $0x58] sm:$0xff]
    %v126 = vld [vmem:[#allocation8 + $0x60] sm:$0xff]
    %v127 = vld [vmem:[#allocation8 + $0x68] sm:$0xff]
    %v128 = vld [vmem:[#allocation8 + $0x70] sm:$0xff]
    %v129 = vld [vmem:[#allocation8 + $0x78] sm:$0xff]
    %130 = vmatpush.msra.mxu0 %v129
    %131 = vmatpush.msra.mxu0 %v128
    %132 = vmatpush.msra.mxu0 %v127
    %133 = vmatpush.msra.mxu0 %v126
    %134 = vmatpush.msra.mxu0 %v125
    %135 = vmatpush.msra.mxu0 %v124
    %136 = vmatpush.msra.mxu0 %v123
    %137 = vmatpush.msra.mxu0 %v122
    %138 = vmatpush.msra.mxu0 %v121
    %139 = vmatpush.msra.mxu0 %v120
    %140 = vmatpush.msra.mxu0 %v119
    %141 = vmatpush.msra.mxu0 %v118
    %142 = vmatpush.msra.mxu0 %v117
    %143 = vmatpush.msra.mxu0 %v116
    %144 = vmatpush.msra.mxu0 %v115
    %145 = vmatpush.msra.mxu0 %v114
    %146 = vmatmul.f32.gmra.mxu0 %v112
    %v147 = vpop.f32.mrf.mxu0
    %v148 = vadd.f32 0.0, %v147
    %149 = vdwg.mxu0
    %v150 = vadd.f32 %v113, %v148
    %151 = vst [vmem:[#allocation2] sm:$0xff] %v150
    // Predicated region
    $region38: #{tpu_custom_call.1} parent=1 // pred_check
      %p152 = pneg %p66
    $region39: #{tpu_custom_call.1} parent=1 // pred_check_branch
      %154 = sbr.rel (%p152) target = $region41
    $region40: #{tpu_custom_call.1} parent=1 // pred_region
      %v155 = vld [vmem:[#allocation2] sm:$0xff]
      %v156 = vld [vmem:[%s4] sm:$0x1]
      %v158 = vperm.slane %v156, 0
      %v160 = vadd.f32 %v155, %v158
      %161 = vst [vmem:[#allocation9] sm:$0xff] %v160
    $region41: #{tpu_custom_call.1} parent=1 // pred_fallthru
      _
    // Predicated region
    $region42: #{tpu_custom_call.1} parent=1 // pred_check
      _
    $region43: #{tpu_custom_call.1} parent=1 // pred_check_branch
      %163 = sbr.rel (0) target = $region45
    $region44: #{tpu_custom_call.1} parent=1 // pred_region
      %165 = vsyncadd [#allocation5], 0
      %s167 = sshll.u32 [#allocation9], 4
      %s168 = int_to_ptr.vmem [resolvable:$true] %s167
      %s169 = sshll.u32 %s5, 4
      %s170 = int_to_ptr.hbm [resolvable:$true] %s169
      %172 = dma.vmem_to_hbm [thread:$0]  %s168, 128, %s170, [#allocation5]
    $region45: #{tpu_custom_call.1} parent=1 // pred_fallthru
      _
    // Predicated region
    $region46: #{tpu_custom_call.1} parent=1 // pred_check
      _
    $region47: #{tpu_custom_call.1} parent=1 // pred_check_branch
      %174 = sbr.rel (0) target = $region49
    $region48: #{tpu_custom_call.1} parent=1 // pred_region
      %176 = dma.done [#allocation5], 128
    $region49: #{tpu_custom_call.1} parent=1 // pred_fallthru
      _
    %177 = vsyncpa [#allocation4], 1
    %178 = vsyncpa [#allocation7], 1
    %179 = vsyncpa [#allocation5], 1

</llo_original>
